<compile_context>
chip_gen: v5e
topology: v5e:2x2
jax: 0.10.0
libtpu: 0.0.40
codegen_flags: <defaults>
</compile_context>

<pallas_src>
import functools

import jax
import jax.numpy as jnp
from jax.experimental import pallas as pl
from jax.experimental.pallas import tpu as pltpu

EPS = 1e-12  # matches torch.nn.functional.normalize default eps


def _rescal_kernel(rels_smem, heads_ref, tails_ref, alpha_ref, rel_w_hbm,
                   out_ref, rel_buf, copy_sems, *, block_b):
    g = pl.program_id(0)

    # ---- In-kernel gather of the block's relation matrices (manual DMA) ----
    copies = []
    for i in range(block_b):                      # static unrolled loop
        idx = rels_smem[g * block_b + i]
        cp = pltpu.make_async_copy(rel_w_hbm.at[idx], rel_buf.at[i],
                                   copy_sems.at[i])
        cp.start()
        copies.append(cp)

    h = heads_ref[...].astype(jnp.float32)        # (Bt, V, F)
    t = tails_ref[...].astype(jnp.float32)        # (Bt, V, F)
    a = alpha_ref[...].astype(jnp.float32)        # (Bt, V, V)

    # F.normalize(x, dim=-1): x * 1/max(||x||_2, eps)  (reciprocal-multiply,
    # keeping the max(sqrt(.), eps) form for exact torch parity).
    h_inv = 1.0 / jnp.maximum(
        jnp.sqrt(jnp.sum(h * h, axis=-1, keepdims=True)), EPS)
    t_inv = 1.0 / jnp.maximum(
        jnp.sqrt(jnp.sum(t * t, axis=-1, keepdims=True)), EPS)
    hn = h * h_inv
    tn = t * t_inv

    # Hide the gather DMA behind the normalization VPU work, then consume it.
    for cp in copies:
        cp.wait()
    r = rel_buf[...].astype(jnp.float32)          # (Bt, F, F)

    # Relation normalize is over the flattened F*F vector -> single norm per
    # batch element; fold it into the final scalar instead of dividing (F, F).
    r_sq = jnp.sum(r * r, axis=2)                 # (Bt, F)
    r_sq = jnp.sum(r_sq, axis=1, keepdims=True)   # (Bt, 1)
    r_inv = 1.0 / jnp.maximum(jnp.sqrt(r_sq), EPS)

    # heads @ rels @ tails^T, batched over the block.
    hr = jnp.einsum('bvf,bfg->bvg', hn, r,
                    preferred_element_type=jnp.float32)   # (Bt, V, F)
    s = jnp.einsum('bvg,bwg->bvw', hr, tn,
                   preferred_element_type=jnp.float32)    # (Bt, V, V)

    w = a * s
    per_b = jnp.sum(w, axis=2)                    # (Bt, V)
    per_b = jnp.sum(per_b, axis=1, keepdims=True)  # (Bt, 1)
    out_ref[0] = per_b * r_inv                    # (Bt, 1)


def rescal_forward(heads, tails, rels, alpha_scores, rel_emb_weight,
                   n_features, *, block_b=None):
    """heads, tails: (B, V, F); rels: (B,) int; alpha_scores: (B, V, V)."""
    B, V, F = heads.shape
    assert F == n_features
    rel_w = rel_emb_weight.reshape(-1, F, F)      # (n_rels, F, F), stays in HBM

    if block_b is None:
        # Size the per-step block against a conservative VMEM budget (double
        # buffered inputs + relation scratch), safe for v7x's 64 MiB VMEM.
        per_b_bytes = (2 * V * F + V * V + F * F) * 4
        block_b = max(1, min(B, (4 << 20) // (2 * per_b_bytes)))

    num_blocks = pl.cdiv(B, block_b)
    b_pad = num_blocks * block_b
    if b_pad != B:
        pad = b_pad - B
        heads = jnp.pad(heads, ((0, pad), (0, 0), (0, 0)))
        tails = jnp.pad(tails, ((0, pad), (0, 0), (0, 0)))
        alpha_scores = jnp.pad(alpha_scores, ((0, pad), (0, 0), (0, 0)))
        rels = jnp.pad(rels, ((0, pad),))         # pad with valid index 0
    rels = rels.astype(jnp.int32)

    grid_spec = pltpu.PrefetchScalarGridSpec(
        num_scalar_prefetch=1,                    # rels -> SMEM
        grid=(num_blocks,),
        in_specs=[
            pl.BlockSpec((block_b, V, F), lambda g, rels: (g, 0, 0)),  # heads
            pl.BlockSpec((block_b, V, F), lambda g, rels: (g, 0, 0)),  # tails
            pl.BlockSpec((block_b, V, V), lambda g, rels: (g, 0, 0)),  # alpha
            pl.BlockSpec(memory_space=pl.ANY),     # relation table (raw HBM)
        ],
        out_specs=pl.BlockSpec((1, block_b, 1), lambda g, rels: (g, 0, 0)),
        scratch_shapes=[
            pltpu.VMEM((block_b, F, F), rel_w.dtype),   # gathered rel matrices
            pltpu.SemaphoreType.DMA((block_b,)),
        ],
    )

    out = pl.pallas_call(
        functools.partial(_rescal_kernel, block_b=block_b),
        out_shape=jax.ShapeDtypeStruct((num_blocks, block_b, 1), jnp.float32),
        grid_spec=grid_spec,
        compiler_params=pltpu.CompilerParams(
            dimension_semantics=("parallel",),    # independent batch blocks
        ),
    )(rels, heads, tails, alpha_scores, rel_w)

    return out.reshape(b_pad)[:B]


def rescal_reference(heads, tails, rels, alpha_scores, rel_emb_weight,
                     n_features):
    """Pure-JAX reference mirroring the PyTorch forward."""
    B = heads.shape[0]
    r = jnp.take(rel_emb_weight, rels, axis=0)
    r = r / jnp.maximum(jnp.linalg.norm(r, axis=-1, keepdims=True), EPS)
    h = heads / jnp.maximum(jnp.linalg.norm(heads, axis=-1, keepdims=True), EPS)
    t = tails / jnp.maximum(jnp.linalg.norm(tails, axis=-1, keepdims=True), EPS)
    r = r.reshape(B, n_features, n_features)
    scores = h @ r @ jnp.swapaxes(t, -2, -1)
    scores = alpha_scores * scores
    return jnp.sum(scores, axis=(-2, -1))


if __name__ == "__main__":
    # Small shapes consistent with the module: B drug pairs, V views, F feats.
    # B=6 with block_b=4 exercises both the multi-block grid and the padding.
    B, V = 6, 8
    n_rels, n_features = 16, 32

    key = jax.random.PRNGKey(0)
    k_w, k_h, k_t, k_r, k_a = jax.random.split(key, 5)

    # Deterministic xavier_uniform_ for nn.Embedding(n_rels, F*F) weight.
    fan_in, fan_out = n_features * n_features, n_rels
    bound = (6.0 / (fan_in + fan_out)) ** 0.5
    rel_emb_weight = jax.random.uniform(
        k_w, (n_rels, n_features * n_features),
        minval=-bound, maxval=bound, dtype=jnp.float32)

    heads = jax.random.normal(k_h, (B, V, n_features), dtype=jnp.float32)
    tails = jax.random.normal(k_t, (B, V, n_features), dtype=jnp.float32)
    rels = jax.random.randint(k_r, (B,), 0, n_rels, dtype=jnp.int32)
    alpha_scores = jax.random.uniform(k_a, (B, V, V), dtype=jnp.float32)

    out = rescal_forward(heads, tails, rels, alpha_scores,
                         rel_emb_weight, n_features, block_b=4)
    out = jax.block_until_ready(out)

    ref = rescal_reference(heads, tails, rels, alpha_scores,
                           rel_emb_weight, n_features)
    assert out.shape == (B,)
    assert jnp.allclose(out, ref, rtol=1e-5, atol=1e-5), (out, ref)

    print("KERNEL_OK")
</pallas_src>

<mosaic_0001>
module attributes {stable_mosaic.version = 11 : i64} {
  func.func @_rescal_kernel(%arg0: i32, %arg1: memref<8xi32, #tpu.memory_space<smem>>, %arg2: memref<4x8x32xf32, #tpu.memory_space<vmem>>, %arg3: memref<4x8x32xf32, #tpu.memory_space<vmem>>, %arg4: memref<4x8x8xf32, #tpu.memory_space<vmem>>, %arg5: memref<16x32x32xf32, #tpu.memory_space<any>>, %arg6: memref<1x4x1xf32, #tpu.memory_space<vmem>>, %arg7: memref<4x32x32xf32, #tpu.memory_space<vmem>>, %arg8: memref<4x!tpu.dma_semaphore, #tpu.memory_space<semaphore_mem>>) attributes {dimension_semantics = [#tpu.dimension_semantics<parallel>], iteration_bounds = array<i64: 2>, scalar_prefetch = 1 : i64, scratch_operands = 2 : i64, tpu.core_type = #tpu.core_type<tc>, window_params = [{transform_indices = @transform_0, window_bounds = array<i64: 4, 8, 32>}, {transform_indices = @transform_1, window_bounds = array<i64: 4, 8, 32>}, {transform_indices = @transform_2, window_bounds = array<i64: 4, 8, 8>}, {}, {transform_indices = @transform_4, window_bounds = array<i64: 1, 4, 1>}]} {
    %c4_i32 = arith.constant 4 : i32
    %0 = arith.muli %arg0, %c4_i32 : i32
    %c0_i32 = arith.constant 0 : i32
    %1 = arith.addi %0, %c0_i32 : i32
    %2 = arith.index_cast %1 : i32 to index
    %3 = memref.load %arg1[%2] : memref<8xi32, #tpu.memory_space<smem>>
    %c0_i32_0 = arith.constant 0 : i32
    %c0_i32_1 = arith.constant 0 : i32
    %c0_i32_2 = arith.constant 0 : i32
    %c0_i32_3 = arith.constant 0 : i32
    %4 = tpu.memref_slice %arg5[%3, %c0_i32_2, %c0_i32_3] : memref<16x32x32xf32, #tpu.memory_space<any>> -> memref<1x32x32xf32, #tpu.memory_space<any>>
    %5 = tpu.memref_squeeze %4 : memref<1x32x32xf32, #tpu.memory_space<any>> -> memref<32x32xf32, #tpu.memory_space<any>>
    %c0_i32_4 = arith.constant 0 : i32
    %c0_i32_5 = arith.constant 0 : i32
    %6 = tpu.memref_slice %arg7[%c0_i32_0, %c0_i32_4, %c0_i32_5] : memref<4x32x32xf32, #tpu.memory_space<vmem>> -> memref<1x32x32xf32, #tpu.memory_space<vmem>>
    %7 = tpu.memref_squeeze %6 : memref<1x32x32xf32, #tpu.memory_space<vmem>> -> memref<32x32xf32, #tpu.memory_space<vmem>>
    %8 = tpu.memref_slice %arg8[%c0_i32_1] : memref<4x!tpu.dma_semaphore, #tpu.memory_space<semaphore_mem>> -> memref<1x!tpu.dma_semaphore, #tpu.memory_space<semaphore_mem>>
    %9 = tpu.memref_squeeze %8 : memref<1x!tpu.dma_semaphore, #tpu.memory_space<semaphore_mem>> -> memref<!tpu.dma_semaphore, #tpu.memory_space<semaphore_mem>>
    tpu.enqueue_dma source(%5 : memref<32x32xf32, #tpu.memory_space<any>>) target(%7 : memref<32x32xf32, #tpu.memory_space<vmem>>) target_semaphore(%9 : memref<!tpu.dma_semaphore, #tpu.memory_space<semaphore_mem>>)
    %c4_i32_6 = arith.constant 4 : i32
    %10 = arith.muli %arg0, %c4_i32_6 : i32
    %c1_i32 = arith.constant 1 : i32
    %11 = arith.addi %10, %c1_i32 : i32
    %12 = arith.index_cast %11 : i32 to index
    %13 = memref.load %arg1[%12] : memref<8xi32, #tpu.memory_space<smem>>
    %c1_i32_7 = arith.constant 1 : i32
    %c1_i32_8 = arith.constant 1 : i32
    %c0_i32_9 = arith.constant 0 : i32
    %c0_i32_10 = arith.constant 0 : i32
    %14 = tpu.memref_slice %arg5[%13, %c0_i32_9, %c0_i32_10] : memref<16x32x32xf32, #tpu.memory_space<any>> -> memref<1x32x32xf32, #tpu.memory_space<any>>
    %15 = tpu.memref_squeeze %14 : memref<1x32x32xf32, #tpu.memory_space<any>> -> memref<32x32xf32, #tpu.memory_space<any>>
    %c0_i32_11 = arith.constant 0 : i32
    %c0_i32_12 = arith.constant 0 : i32
    %16 = tpu.memref_slice %arg7[%c1_i32_7, %c0_i32_11, %c0_i32_12] : memref<4x32x32xf32, #tpu.memory_space<vmem>> -> memref<1x32x32xf32, #tpu.memory_space<vmem>>
    %17 = tpu.memref_squeeze %16 : memref<1x32x32xf32, #tpu.memory_space<vmem>> -> memref<32x32xf32, #tpu.memory_space<vmem>>
    %18 = tpu.memref_slice %arg8[%c1_i32_8] : memref<4x!tpu.dma_semaphore, #tpu.memory_space<semaphore_mem>> -> memref<1x!tpu.dma_semaphore, #tpu.memory_space<semaphore_mem>>
    %19 = tpu.memref_squeeze %18 : memref<1x!tpu.dma_semaphore, #tpu.memory_space<semaphore_mem>> -> memref<!tpu.dma_semaphore, #tpu.memory_space<semaphore_mem>>
    tpu.enqueue_dma source(%15 : memref<32x32xf32, #tpu.memory_space<any>>) target(%17 : memref<32x32xf32, #tpu.memory_space<vmem>>) target_semaphore(%19 : memref<!tpu.dma_semaphore, #tpu.memory_space<semaphore_mem>>)
    %c4_i32_13 = arith.constant 4 : i32
    %20 = arith.muli %arg0, %c4_i32_13 : i32
    %c2_i32 = arith.constant 2 : i32
    %21 = arith.addi %20, %c2_i32 : i32
    %22 = arith.index_cast %21 : i32 to index
    %23 = memref.load %arg1[%22] : memref<8xi32, #tpu.memory_space<smem>>
    %c2_i32_14 = arith.constant 2 : i32
    %c2_i32_15 = arith.constant 2 : i32
    %c0_i32_16 = arith.constant 0 : i32
    %c0_i32_17 = arith.constant 0 : i32
    %24 = tpu.memref_slice %arg5[%23, %c0_i32_16, %c0_i32_17] : memref<16x32x32xf32, #tpu.memory_space<any>> -> memref<1x32x32xf32, #tpu.memory_space<any>>
    %25 = tpu.memref_squeeze %24 : memref<1x32x32xf32, #tpu.memory_space<any>> -> memref<32x32xf32, #tpu.memory_space<any>>
    %c0_i32_18 = arith.constant 0 : i32
    %c0_i32_19 = arith.constant 0 : i32
    %26 = tpu.memref_slice %arg7[%c2_i32_14, %c0_i32_18, %c0_i32_19] : memref<4x32x32xf32, #tpu.memory_space<vmem>> -> memref<1x32x32xf32, #tpu.memory_space<vmem>>
    %27 = tpu.memref_squeeze %26 : memref<1x32x32xf32, #tpu.memory_space<vmem>> -> memref<32x32xf32, #tpu.memory_space<vmem>>
    %28 = tpu.memref_slice %arg8[%c2_i32_15] : memref<4x!tpu.dma_semaphore, #tpu.memory_space<semaphore_mem>> -> memref<1x!tpu.dma_semaphore, #tpu.memory_space<semaphore_mem>>
    %29 = tpu.memref_squeeze %28 : memref<1x!tpu.dma_semaphore, #tpu.memory_space<semaphore_mem>> -> memref<!tpu.dma_semaphore, #tpu.memory_space<semaphore_mem>>
    tpu.enqueue_dma source(%25 : memref<32x32xf32, #tpu.memory_space<any>>) target(%27 : memref<32x32xf32, #tpu.memory_space<vmem>>) target_semaphore(%29 : memref<!tpu.dma_semaphore, #tpu.memory_space<semaphore_mem>>)
    %c4_i32_20 = arith.constant 4 : i32
    %30 = arith.muli %arg0, %c4_i32_20 : i32
    %c3_i32 = arith.constant 3 : i32
    %31 = arith.addi %30, %c3_i32 : i32
    %32 = arith.index_cast %31 : i32 to index
    %33 = memref.load %arg1[%32] : memref<8xi32, #tpu.memory_space<smem>>
    %c3_i32_21 = arith.constant 3 : i32
    %c3_i32_22 = arith.constant 3 : i32
    %c0_i32_23 = arith.constant 0 : i32
    %c0_i32_24 = arith.constant 0 : i32
    %34 = tpu.memref_slice %arg5[%33, %c0_i32_23, %c0_i32_24] : memref<16x32x32xf32, #tpu.memory_space<any>> -> memref<1x32x32xf32, #tpu.memory_space<any>>
    %35 = tpu.memref_squeeze %34 : memref<1x32x32xf32, #tpu.memory_space<any>> -> memref<32x32xf32, #tpu.memory_space<any>>
    %c0_i32_25 = arith.constant 0 : i32
    %c0_i32_26 = arith.constant 0 : i32
    %36 = tpu.memref_slice %arg7[%c3_i32_21, %c0_i32_25, %c0_i32_26] : memref<4x32x32xf32, #tpu.memory_space<vmem>> -> memref<1x32x32xf32, #tpu.memory_space<vmem>>
    %37 = tpu.memref_squeeze %36 : memref<1x32x32xf32, #tpu.memory_space<vmem>> -> memref<32x32xf32, #tpu.memory_space<vmem>>
    %38 = tpu.memref_slice %arg8[%c3_i32_22] : memref<4x!tpu.dma_semaphore, #tpu.memory_space<semaphore_mem>> -> memref<1x!tpu.dma_semaphore, #tpu.memory_space<semaphore_mem>>
    %39 = tpu.memref_squeeze %38 : memref<1x!tpu.dma_semaphore, #tpu.memory_space<semaphore_mem>> -> memref<!tpu.dma_semaphore, #tpu.memory_space<semaphore_mem>>
    tpu.enqueue_dma source(%35 : memref<32x32xf32, #tpu.memory_space<any>>) target(%37 : memref<32x32xf32, #tpu.memory_space<vmem>>) target_semaphore(%39 : memref<!tpu.dma_semaphore, #tpu.memory_space<semaphore_mem>>)
    %c0 = arith.constant 0 : index
    %c0_27 = arith.constant 0 : index
    %c0_28 = arith.constant 0 : index
    %40 = vector.load %arg2[%c0, %c0_27, %c0_28] : memref<4x8x32xf32, #tpu.memory_space<vmem>>, vector<4x8x32xf32>
    %c0_29 = arith.constant 0 : index
    %c0_30 = arith.constant 0 : index
    %c0_31 = arith.constant 0 : index
    %41 = vector.load %arg3[%c0_29, %c0_30, %c0_31] : memref<4x8x32xf32, #tpu.memory_space<vmem>>, vector<4x8x32xf32>
    %c0_32 = arith.constant 0 : index
    %c0_33 = arith.constant 0 : index
    %c0_34 = arith.constant 0 : index
    %42 = vector.load %arg4[%c0_32, %c0_33, %c0_34] : memref<4x8x8xf32, #tpu.memory_space<vmem>>, vector<4x8x8xf32>
    %43 = arith.mulf %40, %40 : vector<4x8x32xf32>
    %cst = arith.constant dense<0.000000e+00> : vector<4x8xf32>
    %44 = vector.multi_reduction <add>, %43, %cst [2] : vector<4x8x32xf32> to vector<4x8xf32>
    %45 = vector.shape_cast %44 : vector<4x8xf32> to vector<4x8x1xf32>
    %46 = math.sqrt %45 : vector<4x8x1xf32>
    %cst_35 = arith.constant 9.99999996E-13 : f32
    %47 = vector.broadcast %cst_35 : f32 to vector<4x8x1xf32>
    %48 = arith.maximumf %46, %47 : vector<4x8x1xf32>
    %cst_36 = arith.constant 1.000000e+00 : f32
    %49 = vector.broadcast %cst_36 : f32 to vector<4x8x1xf32>
    %50 = arith.divf %49, %48 : vector<4x8x1xf32>
    %51 = arith.mulf %41, %41 : vector<4x8x32xf32>
    %cst_37 = arith.constant dense<0.000000e+00> : vector<4x8xf32>
    %52 = vector.multi_reduction <add>, %51, %cst_37 [2] : vector<4x8x32xf32> to vector<4x8xf32>
    %53 = vector.shape_cast %52 : vector<4x8xf32> to vector<4x8x1xf32>
    %54 = math.sqrt %53 : vector<4x8x1xf32>
    %cst_38 = arith.constant 9.99999996E-13 : f32
    %55 = vector.broadcast %cst_38 : f32 to vector<4x8x1xf32>
    %56 = arith.maximumf %54, %55 : vector<4x8x1xf32>
    %cst_39 = arith.constant 1.000000e+00 : f32
    %57 = vector.broadcast %cst_39 : f32 to vector<4x8x1xf32>
    %58 = arith.divf %57, %56 : vector<4x8x1xf32>
    %59 = vector.broadcast %50 : vector<4x8x1xf32> to vector<4x8x32xf32>
    %60 = arith.mulf %40, %59 : vector<4x8x32xf32>
    %61 = vector.broadcast %58 : vector<4x8x1xf32> to vector<4x8x32xf32>
    %62 = arith.mulf %41, %61 : vector<4x8x32xf32>
    %c0_i32_40 = arith.constant 0 : i32
    %c0_i32_41 = arith.constant 0 : i32
    %c0_i32_42 = arith.constant 0 : i32
    %c0_i32_43 = arith.constant 0 : i32
    %63 = tpu.memref_slice %arg5[%3, %c0_i32_42, %c0_i32_43] : memref<16x32x32xf32, #tpu.memory_space<any>> -> memref<1x32x32xf32, #tpu.memory_space<any>>
    %64 = tpu.memref_squeeze %63 : memref<1x32x32xf32, #tpu.memory_space<any>> -> memref<32x32xf32, #tpu.memory_space<any>>
    %c0_i32_44 = arith.constant 0 : i32
    %c0_i32_45 = arith.constant 0 : i32
    %65 = tpu.memref_slice %arg7[%c0_i32_40, %c0_i32_44, %c0_i32_45] : memref<4x32x32xf32, #tpu.memory_space<vmem>> -> memref<1x32x32xf32, #tpu.memory_space<vmem>>
    %66 = tpu.memref_squeeze %65 : memref<1x32x32xf32, #tpu.memory_space<vmem>> -> memref<32x32xf32, #tpu.memory_space<vmem>>
    %67 = tpu.memref_slice %arg8[%c0_i32_41] : memref<4x!tpu.dma_semaphore, #tpu.memory_space<semaphore_mem>> -> memref<1x!tpu.dma_semaphore, #tpu.memory_space<semaphore_mem>>
    %68 = tpu.memref_squeeze %67 : memref<1x!tpu.dma_semaphore, #tpu.memory_space<semaphore_mem>> -> memref<!tpu.dma_semaphore, #tpu.memory_space<semaphore_mem>>
    tpu.wait_dma2 semaphore(%68 : memref<!tpu.dma_semaphore, #tpu.memory_space<semaphore_mem>>) src(%64 : memref<32x32xf32, #tpu.memory_space<any>>) dst(%66 : memref<32x32xf32, #tpu.memory_space<vmem>>)
    %c1_i32_46 = arith.constant 1 : i32
    %c1_i32_47 = arith.constant 1 : i32
    %c0_i32_48 = arith.constant 0 : i32
    %c0_i32_49 = arith.constant 0 : i32
    %69 = tpu.memref_slice %arg5[%13, %c0_i32_48, %c0_i32_49] : memref<16x32x32xf32, #tpu.memory_space<any>> -> memref<1x32x32xf32, #tpu.memory_space<any>>
    %70 = tpu.memref_squeeze %69 : memref<1x32x32xf32, #tpu.memory_space<any>> -> memref<32x32xf32, #tpu.memory_space<any>>
    %c0_i32_50 = arith.constant 0 : i32
    %c0_i32_51 = arith.constant 0 : i32
    %71 = tpu.memref_slice %arg7[%c1_i32_46, %c0_i32_50, %c0_i32_51] : memref<4x32x32xf32, #tpu.memory_space<vmem>> -> memref<1x32x32xf32, #tpu.memory_space<vmem>>
    %72 = tpu.memref_squeeze %71 : memref<1x32x32xf32, #tpu.memory_space<vmem>> -> memref<32x32xf32, #tpu.memory_space<vmem>>
    %73 = tpu.memref_slice %arg8[%c1_i32_47] : memref<4x!tpu.dma_semaphore, #tpu.memory_space<semaphore_mem>> -> memref<1x!tpu.dma_semaphore, #tpu.memory_space<semaphore_mem>>
    %74 = tpu.memref_squeeze %73 : memref<1x!tpu.dma_semaphore, #tpu.memory_space<semaphore_mem>> -> memref<!tpu.dma_semaphore, #tpu.memory_space<semaphore_mem>>
    tpu.wait_dma2 semaphore(%74 : memref<!tpu.dma_semaphore, #tpu.memory_space<semaphore_mem>>) src(%70 : memref<32x32xf32, #tpu.memory_space<any>>) dst(%72 : memref<32x32xf32, #tpu.memory_space<vmem>>)
    %c2_i32_52 = arith.constant 2 : i32
    %c2_i32_53 = arith.constant 2 : i32
    %c0_i32_54 = arith.constant 0 : i32
    %c0_i32_55 = arith.constant 0 : i32
    %75 = tpu.memref_slice %arg5[%23, %c0_i32_54, %c0_i32_55] : memref<16x32x32xf32, #tpu.memory_space<any>> -> memref<1x32x32xf32, #tpu.memory_space<any>>
    %76 = tpu.memref_squeeze %75 : memref<1x32x32xf32, #tpu.memory_space<any>> -> memref<32x32xf32, #tpu.memory_space<any>>
    %c0_i32_56 = arith.constant 0 : i32
    %c0_i32_57 = arith.constant 0 : i32
    %77 = tpu.memref_slice %arg7[%c2_i32_52, %c0_i32_56, %c0_i32_57] : memref<4x32x32xf32, #tpu.memory_space<vmem>> -> memref<1x32x32xf32, #tpu.memory_space<vmem>>
    %78 = tpu.memref_squeeze %77 : memref<1x32x32xf32, #tpu.memory_space<vmem>> -> memref<32x32xf32, #tpu.memory_space<vmem>>
    %79 = tpu.memref_slice %arg8[%c2_i32_53] : memref<4x!tpu.dma_semaphore, #tpu.memory_space<semaphore_mem>> -> memref<1x!tpu.dma_semaphore, #tpu.memory_space<semaphore_mem>>
    %80 = tpu.memref_squeeze %79 : memref<1x!tpu.dma_semaphore, #tpu.memory_space<semaphore_mem>> -> memref<!tpu.dma_semaphore, #tpu.memory_space<semaphore_mem>>
    tpu.wait_dma2 semaphore(%80 : memref<!tpu.dma_semaphore, #tpu.memory_space<semaphore_mem>>) src(%76 : memref<32x32xf32, #tpu.memory_space<any>>) dst(%78 : memref<32x32xf32, #tpu.memory_space<vmem>>)
    %c3_i32_58 = arith.constant 3 : i32
    %c3_i32_59 = arith.constant 3 : i32
    %c0_i32_60 = arith.constant 0 : i32
    %c0_i32_61 = arith.constant 0 : i32
    %81 = tpu.memref_slice %arg5[%33, %c0_i32_60, %c0_i32_61] : memref<16x32x32xf32, #tpu.memory_space<any>> -> memref<1x32x32xf32, #tpu.memory_space<any>>
    %82 = tpu.memref_squeeze %81 : memref<1x32x32xf32, #tpu.memory_space<any>> -> memref<32x32xf32, #tpu.memory_space<any>>
    %c0_i32_62 = arith.constant 0 : i32
    %c0_i32_63 = arith.constant 0 : i32
    %83 = tpu.memref_slice %arg7[%c3_i32_58, %c0_i32_62, %c0_i32_63] : memref<4x32x32xf32, #tpu.memory_space<vmem>> -> memref<1x32x32xf32, #tpu.memory_space<vmem>>
    %84 = tpu.memref_squeeze %83 : memref<1x32x32xf32, #tpu.memory_space<vmem>> -> memref<32x32xf32, #tpu.memory_space<vmem>>
    %85 = tpu.memref_slice %arg8[%c3_i32_59] : memref<4x!tpu.dma_semaphore, #tpu.memory_space<semaphore_mem>> -> memref<1x!tpu.dma_semaphore, #tpu.memory_space<semaphore_mem>>
    %86 = tpu.memref_squeeze %85 : memref<1x!tpu.dma_semaphore, #tpu.memory_space<semaphore_mem>> -> memref<!tpu.dma_semaphore, #tpu.memory_space<semaphore_mem>>
    tpu.wait_dma2 semaphore(%86 : memref<!tpu.dma_semaphore, #tpu.memory_space<semaphore_mem>>) src(%82 : memref<32x32xf32, #tpu.memory_space<any>>) dst(%84 : memref<32x32xf32, #tpu.memory_space<vmem>>)
    %c0_64 = arith.constant 0 : index
    %c0_65 = arith.constant 0 : index
    %c0_66 = arith.constant 0 : index
    %87 = vector.load %arg7[%c0_64, %c0_65, %c0_66] : memref<4x32x32xf32, #tpu.memory_space<vmem>>, vector<4x32x32xf32>
    %88 = arith.mulf %87, %87 : vector<4x32x32xf32>
    %cst_67 = arith.constant dense<0.000000e+00> : vector<4x32xf32>
    %89 = vector.multi_reduction <add>, %88, %cst_67 [2] : vector<4x32x32xf32> to vector<4x32xf32>
    %cst_68 = arith.constant dense<0.000000e+00> : vector<4xf32>
    %90 = vector.multi_reduction <add>, %89, %cst_68 [1] : vector<4x32xf32> to vector<4xf32>
    %91 = vector.shape_cast %90 : vector<4xf32> to vector<4x1xf32>
    %92 = math.sqrt %91 : vector<4x1xf32>
    %cst_69 = arith.constant 9.99999996E-13 : f32
    %93 = vector.broadcast %cst_69 : f32 to vector<4x1xf32>
    %94 = arith.maximumf %92, %93 : vector<4x1xf32>
    %cst_70 = arith.constant 1.000000e+00 : f32
    %95 = vector.broadcast %cst_70 : f32 to vector<4x1xf32>
    %96 = arith.divf %95, %94 : vector<4x1xf32>
    "tpu.trace_start"() <{level = 10 : i32, message = "bvf,bfg->bvg"}> : () -> ()
    %cst_71 = arith.constant dense<0.000000e+00> : vector<4x8x32xf32>
    %97 = tpu.matmul %60, %87, %cst_71 {dimension_numbers = #tpu.dot_dimension_numbers<[2], [1], [1], [2], [0, 0, 0, 1, 1, 2], [0], [0]>} : vector<4x8x32xf32>, vector<4x32x32xf32>, vector<4x8x32xf32> -> vector<4x8x32xf32>
    "tpu.trace_stop"() : () -> ()
    "tpu.trace_start"() <{level = 10 : i32, message = "bvg,bwg->bvw"}> : () -> ()
    %cst_72 = arith.constant dense<0.000000e+00> : vector<4x8x8xf32>
    %98 = tpu.matmul %97, %62, %cst_72 {dimension_numbers = #tpu.dot_dimension_numbers<[2], [2], [1], [1], [0, 0, 0, 1, 1, 1], [0], [0]>} : vector<4x8x32xf32>, vector<4x8x32xf32>, vector<4x8x8xf32> -> vector<4x8x8xf32>
    "tpu.trace_stop"() : () -> ()
    %99 = arith.mulf %42, %98 : vector<4x8x8xf32>
    %cst_73 = arith.constant dense<0.000000e+00> : vector<4x8xf32>
    %100 = vector.multi_reduction <add>, %99, %cst_73 [2] : vector<4x8x8xf32> to vector<4x8xf32>
    %cst_74 = arith.constant dense<0.000000e+00> : vector<4xf32>
    %101 = vector.multi_reduction <add>, %100, %cst_74 [1] : vector<4x8xf32> to vector<4xf32>
    %102 = vector.shape_cast %101 : vector<4xf32> to vector<4x1xf32>
    %103 = arith.mulf %102, %96 : vector<4x1xf32>
    %c0_75 = arith.constant 0 : index
    %c0_76 = arith.constant 0 : index
    %c0_77 = arith.constant 0 : index
    %104 = vector.load %arg6[%c0_75, %c0_76, %c0_77] : memref<1x4x1xf32, #tpu.memory_space<vmem>>, vector<1x4x1xf32>
    %105 = vector.shape_cast %104 : vector<1x4x1xf32> to vector<4x1xf32>
    %106 = vector.shape_cast %103 : vector<4x1xf32> to vector<1x4x1xf32>
    tpu.vector_store %arg6[%c0_75, %c0_76, %c0_77], %106 {strides = array<i32>} : memref<1x4x1xf32, #tpu.memory_space<vmem>>, vector<1x4x1xf32>,
    return
  }
  func.func @transform_0(%arg0: i32, %arg1: memref<8xi32, #tpu.memory_space<smem>>) -> (i32, i32, i32) {
    %c0_i32 = arith.constant 0 : i32
    %c0_i32_0 = arith.constant 0 : i32
    %c0_i32_1 = arith.constant 0 : i32
    return %arg0, %c0_i32, %c0_i32_0 : i32, i32, i32
  }
  func.func @transform_1(%arg0: i32, %arg1: memref<8xi32, #tpu.memory_space<smem>>) -> (i32, i32, i32) {
    %c0_i32 = arith.constant 0 : i32
    %c0_i32_0 = arith.constant 0 : i32
    %c0_i32_1 = arith.constant 0 : i32
    return %arg0, %c0_i32, %c0_i32_0 : i32, i32, i32
  }
  func.func @transform_2(%arg0: i32, %arg1: memref<8xi32, #tpu.memory_space<smem>>) -> (i32, i32, i32) {
    %c0_i32 = arith.constant 0 : i32
    %c0_i32_0 = arith.constant 0 : i32
    %c0_i32_1 = arith.constant 0 : i32
    return %arg0, %c0_i32, %c0_i32_0 : i32, i32, i32
  }
  func.func @transform_4(%arg0: i32, %arg1: memref<8xi32, #tpu.memory_space<smem>>) -> (i32, i32, i32) {
    %c0_i32 = arith.constant 0 : i32
    %c0_i32_0 = arith.constant 0 : i32
    %c0_i32_1 = arith.constant 0 : i32
    return %arg0, %c0_i32, %c0_i32_0 : i32, i32, i32
  }
}

</mosaic_0001>

<llo_original>
// kernel: tpu_custom_call.1
$region0: #{tpu_custom_call.1}
  #allocation0 [shape = 'u32[]', space=smem, size = 0x4, offset = 0x4, fixed_abs, tag = 'smem constant byte address 0x4 - core index']
  #allocation1 [shape = 'u32[72,128]{1,0:T(1,128)}', space=vmem, size = 0x9000, scoped, tag = 'internal scratch']
  #allocation2 [shape = 'f32[4,32,32]{2,1,0:T(8,128)}', space=vmem, size = 0x10000, scoped, tag = 'scratch operand']
  #allocation3 [shape = 's32[4]{0}', space=sflag, size = 0x10, scoped, tag = 'scratch operand']
  #allocation4 [shape = 's32[1]{0}', space=sflag, size = 0x4, scoped, tag = 'scoped memory for tpu_custom_call.1']
  #allocation5 [shape = 'u8[512]{0}', space=smem, size = 0x200, scoped, tag = 'prefetched SMEM operand 0']
  #allocation11 [shape = 's32[]', space=sflag, size = 0x4, offset = 0, fixed_abs, tag = 'sflag constant byte address 0x0 - dummy sync flag']
  #allocation12 [shape = 's32[]', space=sflag, size = 0x4, offset = 0, fixed_abs, tag = 'sflag constant byte address 0x0 - dummy sync flag']
  #allocation13 [shape = 'u32[]', space=smem, size = 0x4, offset = 0x44, fixed_abs, tag = 'smem constant byte address 0x44 - assertion arg 0']
  #allocation14 [shape = 'u32[]', space=smem, size = 0x4, offset = 0x48, fixed_abs, tag = 'smem constant byte address 0x48 - assertion arg 1']
  #allocation15 [shape = 's32[]', space=sflag, size = 0x4, offset = 0, fixed_abs, tag = 'sflag constant byte address 0x0 - dummy sync flag']
  #allocation16 [shape = 's32[]', space=sflag, size = 0x4, offset = 0, fixed_abs, tag = 'sflag constant byte address 0x0 - dummy sync flag']
  #allocation17 [shape = 's32[]', space=sflag, size = 0x4, offset = 0, fixed_abs, tag = 'sflag constant byte address 0x0 - dummy sync flag']
  #allocation18 [shape = 's32[]', space=sflag, size = 0x4, offset = 0, fixed_abs, tag = 'sflag constant byte address 0x0 - dummy sync flag']
  #allocation19 [shape = 's32[]', space=sflag, size = 0x4, offset = 0, fixed_abs, tag = 'sflag constant byte address 0x0 - dummy sync flag']
  #allocation20 [shape = 's32[]', space=sflag, size = 0x4, offset = 0, fixed_abs, tag = 'sflag constant byte address 0x0 - dummy sync flag']
  %s0 = inlined_call_operand.hbm [shape: s32[8], index: 0, kind: input, shape index: {}]
  %s1 = inlined_call_operand.hbm [shape: f32[8,8,32], index: 1, kind: input, shape index: {}]
  %s2 = inlined_call_operand.hbm [shape: f32[8,8,32], index: 2, kind: input, shape index: {}]
  %s3 = inlined_call_operand.hbm [shape: f32[8,8,8], index: 3, kind: input, shape index: {}]
  %s4 = inlined_call_operand.hbm [shape: f32[16,32,32], index: 4, kind: input, shape index: {}]
  %s5 = inlined_call_operand.vmem [shape: f32[2,4,1], index: 5, kind: output, shape index: {}]
  %s6 = sld [smem:[#allocation0]]
  $region73: #{tpu_custom_call.1} parent=0
    _
  %s8 = ssub.s32 1, %s6
  %s9 = scalar_select 0, %s8, %s6
  %s11 = sshll.u32 %s0, 4
  %s12 = int_to_ptr.hbm [resolvable:$true] %s11
  %14 = dma.hbm_to_smem %s12, 16, [#allocation5], [#allocation4]
  %16 = dma.done [#allocation4], 16
  %17 = sfence
  $region1: #{tpu_custom_call.1} parent=0
    #allocation6 [shape = 'u8[32768]{0}', space=vmem, size = 0x8000, scoped, tag = 'input window, operand 1']
    #allocation7 [shape = 's32[2]{0}', space=sflag, size = 0x8, scoped, tag = 'scoped memory for tpu_custom_call.1']
    #allocation8 [shape = 'u8[32768]{0}', space=vmem, size = 0x8000, scoped, tag = 'input window, operand 2']
    #allocation9 [shape = 's32[2]{0}', space=sflag, size = 0x8, scoped, tag = 'scoped memory for tpu_custom_call.1']
    #allocation10 [shape = 'u8[32768]{0}', space=vmem, size = 0x8000, scoped, tag = 'input window, operand 3']
    %18 = vsyncpa [#allocation7], 0
    %s19 = scalar_lea.sflag [#allocation7], 1
    %20 = vsyncpa %s19, 0
    %21 = vsyncpa [#allocation9], 0
    %s22 = scalar_lea.sflag [#allocation9], 1
    %23 = vsyncpa %s22, 0
    loop: start=0, step=1, limit=4
    $region2: #{tpu_custom_call.1} parent=1 // loop_pre_header
      _
    $region3: #{tpu_custom_call.1} parent=1 // loop_header
      %s25 = sphi 0, %s29
      %p26 = scmp.ge.s32.totalorder %s25, 4
      %s35 = sphi 0, %s37
      %s38 = sphi 0, %s35
      %s39 = sphi 0, %s38
      %s55 = sphi 0, %s39
      %s61 = sphi 0, %s63
      %s64 = sphi 0, %s61
      %s65 = sphi 0, %s64
      %s81 = sphi 0, %s65
      %s87 = sphi 0, %s89
      %s90 = sphi 0, %s87
      %s91 = sphi 0, %s90
      %s107 = sphi 0, %s91
      %s113 = sphi 0, %s115
      %s116 = sphi 0, %s113
      %s117 = sphi 0, %s116
      %s133 = sphi 0, %s117
    $region4: #{tpu_custom_call.1} parent=1 // loop_header_branch
      %28 = sbr.rel (%p26) target = $region8
    $region5: #{tpu_custom_call.1} parent=1 // loop_body
      %s30 = ssub.s32 %s25, 1
      %s31 = ssub.s32 %s25, 2
      %s32 = sadd.s32 %s25, 1
      %s33 = ssub.s32 %s25, %s32
      %p34 = scmp.eq.s32.totalorder %s33, 0
      %s36 = sadd.s32 %s35, 1
      %s37 = scalar_select %p34, %s35, %s36
      %p40 = pneg %p34
      %p41 = scmp.eq.s32.totalorder %s25, 1
      %p42 = por %p40, %p41
      %p43 = scmp.ne.s32.totalorder %s35, %s38
      %p44 = scmp.eq.s32.totalorder %s25, 0
      %p45 = por %p43, %p44
      %p46 = scmp.ne.s32.totalorder %s35, %s38
      %p47 = scmp.eq.s32.totalorder %s30, 1
      %p48 = por %p46, %p47
      %p49 = scmp.ne.s32.totalorder %s38, %s39
      %p50 = scmp.eq.s32.totalorder %s30, 0
      %p51 = por %p49, %p50
      %p52 = scmp.ne.s32.totalorder %s38, %s39
      %p53 = scmp.eq.s32.totalorder %s31, 1
      %p54 = por %p52, %p53
      %p56 = scmp.ne.s32.totalorder %s39, %s55
      %p57 = scmp.eq.s32.totalorder %s31, 0
      %p58 = por %p56, %p57
      %s59 = ssub.s32 %s25, %s32
      %p60 = scmp.eq.s32.totalorder %s59, 0
      %s62 = sadd.s32 %s61, 1
      %s63 = scalar_select %p60, %s61, %s62
      %p66 = pneg %p60
      %p67 = scmp.eq.s32.totalorder %s25, 1
      %p68 = por %p66, %p67
      %p69 = scmp.ne.s32.totalorder %s61, %s64
      %p70 = scmp.eq.s32.totalorder %s25, 0
      %p71 = por %p69, %p70
      %p72 = scmp.ne.s32.totalorder %s61, %s64
      %p73 = scmp.eq.s32.totalorder %s30, 1
      %p74 = por %p72, %p73
      %p75 = scmp.ne.s32.totalorder %s64, %s65
      %p76 = scmp.eq.s32.totalorder %s30, 0
      %p77 = por %p75, %p76
      %p78 = scmp.ne.s32.totalorder %s64, %s65
      %p79 = scmp.eq.s32.totalorder %s31, 1
      %p80 = por %p78, %p79
      %p82 = scmp.ne.s32.totalorder %s65, %s81
      %p83 = scmp.eq.s32.totalorder %s31, 0
      %p84 = por %p82, %p83
      %s85 = ssub.s32 %s25, %s32
      %p86 = scmp.eq.s32.totalorder %s85, 0
      %s88 = sadd.s32 %s87, 1
      %s89 = scalar_select %p86, %s87, %s88
      %p92 = pneg %p86
      %p93 = scmp.eq.s32.totalorder %s25, 1
      %p94 = por %p92, %p93
      %p95 = scmp.ne.s32.totalorder %s87, %s90
      %p96 = scmp.eq.s32.totalorder %s25, 0
      %p97 = por %p95, %p96
      %p98 = scmp.ne.s32.totalorder %s87, %s90
      %p99 = scmp.eq.s32.totalorder %s30, 1
      %p100 = por %p98, %p99
      %p101 = scmp.ne.s32.totalorder %s90, %s91
      %p102 = scmp.eq.s32.totalorder %s30, 0
      %p103 = por %p101, %p102
      %p104 = scmp.ne.s32.totalorder %s90, %s91
      %p105 = scmp.eq.s32.totalorder %s31, 1
      %p106 = por %p104, %p105
      %p108 = scmp.ne.s32.totalorder %s91, %s107
      %p109 = scmp.eq.s32.totalorder %s31, 0
      %p110 = por %p108, %p109
      %s111 = ssub.s32 %s25, %s32
      %p112 = scmp.eq.s32.totalorder %s111, 0
      %s114 = sadd.s32 %s113, 1
      %s115 = scalar_select %p112, %s113, %s114
      %p118 = pneg %p112
      %p119 = scmp.eq.s32.totalorder %s25, 1
      %p120 = por %p118, %p119
      %p121 = scmp.ne.s32.totalorder %s113, %s116
      %p122 = scmp.eq.s32.totalorder %s25, 0
      %p123 = por %p121, %p122
      %p124 = scmp.ne.s32.totalorder %s113, %s116
      %p125 = scmp.eq.s32.totalorder %s30, 1
      %p126 = por %p124, %p125
      %p127 = scmp.ne.s32.totalorder %s116, %s117
      %p128 = scmp.eq.s32.totalorder %s30, 0
      %p129 = por %p127, %p128
      %p130 = scmp.ne.s32.totalorder %s116, %s117
      %p131 = scmp.eq.s32.totalorder %s31, 1
      %p132 = por %p130, %p131
      %p134 = scmp.ne.s32.totalorder %s117, %s133
      %p135 = scmp.eq.s32.totalorder %s31, 0
      %p136 = por %p134, %p135
      %p137 = scmp.le.s32.totalorder 1, %s25
      %p138 = scmp.lt.s32.totalorder %s25, 3
      %p139 = pnand %p137, %p138
      %p140 = pneg %p139
      // Predicated region
      $region9: #{tpu_custom_call.1} parent=5 // pred_check
        _
      $region10: #{tpu_custom_call.1} parent=5 // pred_check_branch
        %142 = sbr.rel (%p139) target = $region12
      $region11: #{tpu_custom_call.1} parent=5 // pred_region
        %s143 = ssub.s32 %s25, 1
      $region12: #{tpu_custom_call.1} parent=5 // pred_fallthru
        _
      %p144 = scmp.lt.s32.totalorder %s25, 2
      // Predicated region
      $region13: #{tpu_custom_call.1} parent=5 // pred_check
        %p145 = pneg %p144
      $region14: #{tpu_custom_call.1} parent=5 // pred_check_branch
        %147 = sbr.rel (%p145) target = $region16
      $region15: #{tpu_custom_call.1} parent=5 // pred_region
        // Predicated region
        $region17: #{tpu_custom_call.1} parent=15 // pred_check
          %p148 = pneg %p45
        $region18: #{tpu_custom_call.1} parent=15 // pred_check_branch
          %150 = sbr.rel (%p148) target = $region20
        $region19: #{tpu_custom_call.1} parent=15 // pred_region
          %s151 = sand.u32 %s35, 1
          %s152 = scalar_lea.sflag [#allocation7], %s151
          %s153 = sand.u32 %s35, 1
          %s154 = smul.addr %s153, 32
          %s155 = scalar_lea.vmem [#allocation6], %s154
          %s156 = smul.u32 4, %s25
          %158 = vsyncadd %s152, 0
          %s159 = smul.addr %s156, 8
          %s160 = scalar_lea.hbm %s1, %s159
          %s161 = sshll.u32 %s160, 4
          %s162 = int_to_ptr.hbm [resolvable:$true] %s161
          %s163 = sshll.u32 %s155, 4
          %s164 = int_to_ptr.vmem [resolvable:$true] %s163
          %169 = dma.hbm_to_vmem [thread:$0]  %s162, 512, %s164, %s152, 128, 128, 8
        $region20: #{tpu_custom_call.1} parent=15 // pred_fallthru
          _
        // Predicated region
        $region21: #{tpu_custom_call.1} parent=15 // pred_check
          %p170 = pneg %p71
        $region22: #{tpu_custom_call.1} parent=15 // pred_check_branch
          %172 = sbr.rel (%p170) target = $region24
        $region23: #{tpu_custom_call.1} parent=15 // pred_region
          %s173 = sand.u32 %s25, 1
          %s174 = scalar_lea.sflag [#allocation9], %s173
          %s175 = sand.u32 %s61, 1
          %s176 = smul.addr %s175, 32
          %s177 = scalar_lea.vmem [#allocation8], %s176
          %s178 = smul.u32 4, %s25
          %180 = vsyncadd %s174, 0
          %s181 = smul.addr %s178, 8
          %s182 = scalar_lea.hbm %s2, %s181
          %s183 = sshll.u32 %s182, 4
          %s184 = int_to_ptr.hbm [resolvable:$true] %s183
          %s185 = sshll.u32 %s177, 4
          %s186 = int_to_ptr.vmem [resolvable:$true] %s185
          %191 = dma.hbm_to_vmem [thread:$0]  %s184, 512, %s186, %s174, 128, 128, 8
        $region24: #{tpu_custom_call.1} parent=15 // pred_fallthru
          _
        // Predicated region
        $region25: #{tpu_custom_call.1} parent=15 // pred_check
          %p192 = pneg %p97
        $region26: #{tpu_custom_call.1} parent=15 // pred_check_branch
          %194 = sbr.rel (%p192) target = $region28
        $region27: #{tpu_custom_call.1} parent=15 // pred_region
          %s195 = sand.u32 %s25, 1
          %s196 = scalar_lea.sflag [#allocation9], %s195
          %s197 = sand.u32 %s87, 1
          %s198 = smul.addr %s197, 32
          %s199 = scalar_lea.vmem [#allocation10], %s198
          %s200 = smul.u32 4, %s25
          %202 = vsyncadd %s196, 0
          %s203 = smul.addr %s200, 8
          %s204 = scalar_lea.hbm %s3, %s203
          %s205 = sshll.u32 %s204, 4
          %s206 = int_to_ptr.hbm [resolvable:$true] %s205
          %s207 = sshll.u32 %s199, 4
          %s208 = int_to_ptr.vmem [resolvable:$true] %s207
          %213 = dma.hbm_to_vmem [thread:$0]  %s206, 512, %s208, %s196, 128, 128, 8
        $region28: #{tpu_custom_call.1} parent=15 // pred_fallthru
          _
      $region16: #{tpu_custom_call.1} parent=5 // pred_fallthru
        _
      %p214 = scmp.le.s32.totalorder 1, %s25
      %p215 = scmp.lt.s32.totalorder %s25, 3
      %p216 = pnand %p214, %p215
      %p217 = pneg %p216
      // Predicated region
      $region29: #{tpu_custom_call.1} parent=5 // pred_check
        _
      $region30: #{tpu_custom_call.1} parent=5 // pred_check_branch
        %219 = sbr.rel (%p216) target = $region32
      $region31: #{tpu_custom_call.1} parent=5 // pred_region
        %s220 = ssub.s32 %s25, 1
        %s221 = sand.u32 %s38, 1
        %s222 = scalar_lea.sflag [#allocation7], %s221
        %s223 = sand.u32 %s38, 1
        %s224 = smul.addr %s223, 32
        %s225 = scalar_lea.vmem [#allocation6], %s224
        // Predicated region
        $region33: #{tpu_custom_call.1} parent=31 // pred_check
          %p226 = pneg %p51
        $region34: #{tpu_custom_call.1} parent=31 // pred_check_branch
          %228 = sbr.rel (%p226) target = $region36
        $region35: #{tpu_custom_call.1} parent=31 // pred_region
          %230 = dma.done %s222, 512
        $region36: #{tpu_custom_call.1} parent=31 // pred_fallthru
          _
        %s231 = sand.u32 %s30, 1
        %s232 = scalar_lea.sflag [#allocation9], %s231
        %s233 = sand.u32 %s64, 1
        %s234 = smul.addr %s233, 32
        %s235 = scalar_lea.vmem [#allocation8], %s234
        // Predicated region
        $region37: #{tpu_custom_call.1} parent=31 // pred_check
          %p236 = pneg %p77
        $region38: #{tpu_custom_call.1} parent=31 // pred_check_branch
          %238 = sbr.rel (%p236) target = $region40
        $region39: #{tpu_custom_call.1} parent=31 // pred_region
          %240 = dma.done %s232, 512
        $region40: #{tpu_custom_call.1} parent=31 // pred_fallthru
          _
        %s241 = sand.u32 %s30, 1
        %s242 = scalar_lea.sflag [#allocation9], %s241
        %s243 = sand.u32 %s90, 1
        %s244 = smul.addr %s243, 32
        %s245 = scalar_lea.vmem [#allocation10], %s244
        // Predicated region
        $region41: #{tpu_custom_call.1} parent=31 // pred_check
          %p246 = pneg %p103
        $region42: #{tpu_custom_call.1} parent=31 // pred_check_branch
          %248 = sbr.rel (%p246) target = $region44
        $region43: #{tpu_custom_call.1} parent=31 // pred_region
          %250 = dma.done %s242, 512
        $region44: #{tpu_custom_call.1} parent=31 // pred_fallthru
          _
        %s251 = sand.u32 %s38, 1
        %s252 = scalar_lea.sflag [#allocation7], %s251
        %s253 = sand.u32 %s38, 1
        %s254 = smul.addr %s253, 32
        %s255 = scalar_lea.vmem [#allocation6], %s254
        %p256 = pneg %p51
        %p257 = pneg %p48
        %s258 = sand.u32 %s30, 1
        %s259 = scalar_lea.sflag [#allocation9], %s258
        %s260 = sand.u32 %s64, 1
        %s261 = smul.addr %s260, 32
        %s262 = scalar_lea.vmem [#allocation8], %s261
        %p263 = pneg %p77
        %p264 = pneg %p74
        %s265 = sand.u32 %s30, 1
        %s266 = scalar_lea.sflag [#allocation9], %s265
        %s267 = sand.u32 %s90, 1
        %s268 = smul.addr %s267, 32
        %s269 = scalar_lea.vmem [#allocation10], %s268
        %p270 = pneg %p103
        %p271 = pneg %p100
        %p272 = pneg %p129
        %p273 = pneg %p126
        %p274 = scmp.lt.s32.totalorder %s30, 1
        %s275 = scalar_select %p274, %s30, 1
        %s276 = smul.addr %s275, 4
        %s277 = scalar_lea.vmem %s5, %s276
        %s278 = smul.u32 4, %s30
        %s279 = smul.u32 4, %s30
        %s280 = smul.u32 4, %s30
        %p281 = scmp.lt.s32.totalorder %s30, 1
        %s282 = scalar_select %p281, %s30, 1
        %s283 = smul.addr %s282, 4
        %s284 = scalar_lea.vmem %s5, %s283
        %s285 = smul.u32 %s30, 4
        %s286 = sld [smem:[#allocation5 + %s285]]
        %s287 = smul.u32 %s286, 32
        %s288 = scalar_lea.hbm %s4, %s287
        // Predicated region
        $region45: #{tpu_custom_call.1} parent=31 // pred_check
          _
        $region46: #{tpu_custom_call.1} parent=31 // pred_check_branch
          %290 = sbr.rel target = $region48
        $region47: #{tpu_custom_call.1} parent=31 // pred_region
          %291 = sst [smem:[#allocation13]] [#allocation12]
          %292 = sst [smem:[#allocation14]] [#allocation11]
        $region48: #{tpu_custom_call.1} parent=31 // pred_fallthru
          _
        %294 = shalt.err (0)
        %s296 = sshll.u32 %s288, 4
        %s297 = int_to_ptr.hbm [resolvable:$true] %s296
        %s298 = sshll.u32 [#allocation2], 4
        %s299 = int_to_ptr.vmem [resolvable:$true] %s298
        %301 = dma.hbm_to_vmem [thread:$0]  %s297, 512, %s299, [#allocation3]
        %s302 = sadd.s32 %s285, 1
        %s303 = sld [smem:[#allocation5 + %s302]]
        %s304 = smul.u32 %s303, 32
        %s305 = scalar_lea.hbm %s4, %s304
        %s306 = scalar_lea.vmem [#allocation2], 32
        %s307 = scalar_lea.sflag [#allocation3], 1
        // Predicated region
        $region49: #{tpu_custom_call.1} parent=31 // pred_check
          _
        $region50: #{tpu_custom_call.1} parent=31 // pred_check_branch
          %309 = sbr.rel target = $region52
        $region51: #{tpu_custom_call.1} parent=31 // pred_region
          %310 = sst [smem:[#allocation13]] [#allocation16]
          %311 = sst [smem:[#allocation14]] [#allocation15]
        $region52: #{tpu_custom_call.1} parent=31 // pred_fallthru
          _
        %313 = shalt.err (0)
        %s315 = sshll.u32 %s305, 4
        %s316 = int_to_ptr.hbm [resolvable:$true] %s315
        %s317 = sshll.u32 %s306, 4
        %s318 = int_to_ptr.vmem [resolvable:$true] %s317
        %320 = dma.hbm_to_vmem [thread:$0]  %s316, 512, %s318, %s307
        %s321 = sadd.s32 %s285, 2
        %s322 = sld [smem:[#allocation5 + %s321]]
        %s323 = smul.u32 %s322, 32
        %s324 = scalar_lea.hbm %s4, %s323
        %s325 = scalar_lea.vmem [#allocation2], 64
        %s326 = scalar_lea.sflag [#allocation3], 2
        // Predicated region
        $region53: #{tpu_custom_call.1} parent=31 // pred_check
          _
        $region54: #{tpu_custom_call.1} parent=31 // pred_check_branch
          %328 = sbr.rel target = $region56
        $region55: #{tpu_custom_call.1} parent=31 // pred_region
          %329 = sst [smem:[#allocation13]] [#allocation18]
          %330 = sst [smem:[#allocation14]] [#allocation17]
        $region56: #{tpu_custom_call.1} parent=31 // pred_fallthru
          _
        %332 = shalt.err (0)
        %s334 = sshll.u32 %s324, 4
        %s335 = int_to_ptr.hbm [resolvable:$true] %s334
        %s336 = sshll.u32 %s325, 4
        %s337 = int_to_ptr.vmem [resolvable:$true] %s336
        %339 = dma.hbm_to_vmem [thread:$0]  %s335, 512, %s337, %s326
        %s340 = sadd.s32 %s285, 3
        %s341 = sld [smem:[#allocation5 + %s340]]
        %s342 = smul.u32 %s341, 32
        %s343 = scalar_lea.hbm %s4, %s342
        %s344 = scalar_lea.vmem [#allocation2], 96
        %s345 = scalar_lea.sflag [#allocation3], 3
        // Predicated region
        $region57: #{tpu_custom_call.1} parent=31 // pred_check
          _
        $region58: #{tpu_custom_call.1} parent=31 // pred_check_branch
          %347 = sbr.rel target = $region60
        $region59: #{tpu_custom_call.1} parent=31 // pred_region
          %348 = sst [smem:[#allocation13]] [#allocation20]
          %349 = sst [smem:[#allocation14]] [#allocation19]
        $region60: #{tpu_custom_call.1} parent=31 // pred_fallthru
          _
        %351 = shalt.err (0)
        %s353 = sshll.u32 %s343, 4
        %s354 = int_to_ptr.hbm [resolvable:$true] %s353
        %s355 = sshll.u32 %s344, 4
        %s356 = int_to_ptr.vmem [resolvable:$true] %s355
        %358 = dma.hbm_to_vmem [thread:$0]  %s354, 512, %s356, %s345
        %v359 = vld [vmem:[%s225] sm:$0xff]
        %v360 = vld [vmem:[%s225 + $0x8] sm:$0xff]
        %v361 = vld [vmem:[%s225 + $0x10] sm:$0xff]
        %v362 = vld [vmem:[%s225 + $0x18] sm:$0xff]
        %v363 = vld [vmem:[%s235] sm:$0xff]
        %v364 = vld [vmem:[%s235 + $0x8] sm:$0xff]
        %v365 = vld [vmem:[%s235 + $0x10] sm:$0xff]
        %v366 = vld [vmem:[%s235 + $0x18] sm:$0xff]
        %v367 = vld [vmem:[%s245] sm:$0xff]
        %v368 = vld [vmem:[%s245 + $0x8] sm:$0xff]
        %v369 = vld [vmem:[%s245 + $0x10] sm:$0xff]
        %v370 = vld [vmem:[%s245 + $0x18] sm:$0xff]
        %v371 = vmul.f32 %v359, %v359
        %v372 = vmul.f32 %v360, %v360
        %v373 = vmul.f32 %v361, %v361
        %v374 = vmul.f32 %v362, %v362
        %vm375 = vcmask 261120
        %v376 = vsel %vm375, %v371, 0.0
        %377 = vadd.xlane.f32.xlu0 %v376
        %v378 = vpop.xlane.xlu0 %377
        %v379 = vsel %vm375, %v372, 0.0
        %380 = vadd.xlane.f32.xlu0 %v379
        %v381 = vpop.xlane.xlu0 %380
        %v382 = vsel %vm375, %v373, 0.0
        %383 = vadd.xlane.f32.xlu0 %v382
        %v384 = vpop.xlane.xlu0 %383
        %v385 = vsel %vm375, %v374, 0.0
        %386 = vadd.xlane.f32.xlu0 %v385
        %v387 = vpop.xlane.xlu0 %386
        %v388 = vrsqrt.pop %v378
        %v389 = vmul.f32 %v388, %v378
        %v390 = vmul.f32 %v389, %v388
        %v391 = vmul.f32 0.5, %v390
        %v392 = vsub.f32 1.5, %v391
        %v393 = vmul.f32 %v388, %v392
        %v394 = vmul.f32 %v378, %v393
        %vm395 = vcmp.eq.f32.partialorder %v378, inf
        %v396 = vsel %vm395, %v378, %v394
        %vm397 = vcmp.eq.f32.partialorder %v378, 0.0
        %v398 = vand.u32 %v378, 2147483648
        %v399 = vsel %vm397, %v398, %v396
        %v400 = vrsqrt.pop %v381
        %v401 = vmul.f32 %v400, %v381
        %v402 = vmul.f32 %v401, %v400
        %v403 = vmul.f32 0.5, %v402
        %v404 = vsub.f32 1.5, %v403
        %v405 = vmul.f32 %v400, %v404
        %v406 = vmul.f32 %v381, %v405
        %vm407 = vcmp.eq.f32.partialorder %v381, inf
        %v408 = vsel %vm407, %v381, %v406
        %vm409 = vcmp.eq.f32.partialorder %v381, 0.0
        %v410 = vand.u32 %v381, 2147483648
        %v411 = vsel %vm409, %v410, %v408
        %v412 = vrsqrt.pop %v384
        %v413 = vmul.f32 %v412, %v384
        %v414 = vmul.f32 %v413, %v412
        %v415 = vmul.f32 0.5, %v414
        %v416 = vsub.f32 1.5, %v415
        %v417 = vmul.f32 %v412, %v416
        %v418 = vmul.f32 %v384, %v417
        %vm419 = vcmp.eq.f32.partialorder %v384, inf
        %v420 = vsel %vm419, %v384, %v418
        %vm421 = vcmp.eq.f32.partialorder %v384, 0.0
        %v422 = vand.u32 %v384, 2147483648
        %v423 = vsel %vm421, %v422, %v420
        %v424 = vrsqrt.pop %v387
        %v425 = vmul.f32 %v424, %v387
        %v426 = vmul.f32 %v425, %v424
        %v427 = vmul.f32 0.5, %v426
        %v428 = vsub.f32 1.5, %v427
        %v429 = vmul.f32 %v424, %v428
        %v430 = vmul.f32 %v387, %v429
        %vm431 = vcmp.eq.f32.partialorder %v387, inf
        %v432 = vsel %vm431, %v387, %v430
        %vm433 = vcmp.eq.f32.partialorder %v387, 0.0
        %v434 = vand.u32 %v387, 2147483648
        %v435 = vsel %vm433, %v434, %v432
        %v436 = vmax.f32 %v399, 1e-12
        %v437 = vmax.f32 %v411, 1e-12
        %v438 = vmax.f32 %v423, 1e-12
        %v439 = vmax.f32 %v435, 1e-12
        %v440 = vrcp.pop %v436
        %v441 = vmul.f32 %v436, %v440
        %v442 = vsub.f32 1.0, %v441
        %v443 = vmul.f32 %v440, %v442
        %v444 = vadd.f32 %v440, %v443
        %vm445 = vweird.f32 %v436
        %vm446 = vweird.f32 %v440
        %vm447 = vmor %vm445, %vm446
        %v448 = vsel %vm447, %v440, %v444
        %v449 = vand.u32 2147483647, %v436
        %vm450 = vcmp.eq.f32.partialorder %v449, 8.507059e+37
        %v451 = vand.u32 %v436, 2147483648
        %v452 = vor.u32 1.1754944e-38, %v451
        %v453 = vsel %vm450, %v452, %v448
        %v454 = vmul.f32 1.0, %v453
        %v455 = vrcp.pop %v437
        %v456 = vmul.f32 %v437, %v455
        %v457 = vsub.f32 1.0, %v456
        %v458 = vmul.f32 %v455, %v457
        %v459 = vadd.f32 %v455, %v458
        %vm460 = vweird.f32 %v437
        %vm461 = vweird.f32 %v455
        %vm462 = vmor %vm460, %vm461
        %v463 = vsel %vm462, %v455, %v459
        %v464 = vand.u32 2147483647, %v437
        %vm465 = vcmp.eq.f32.partialorder %v464, 8.507059e+37
        %v466 = vand.u32 %v437, 2147483648
        %v467 = vor.u32 1.1754944e-38, %v466
        %v468 = vsel %vm465, %v467, %v463
        %v469 = vmul.f32 1.0, %v468
        %v470 = vrcp.pop %v438
        %v471 = vmul.f32 %v438, %v470
        %v472 = vsub.f32 1.0, %v471
        %v473 = vmul.f32 %v470, %v472
        %v474 = vadd.f32 %v470, %v473
        %vm475 = vweird.f32 %v438
        %vm476 = vweird.f32 %v470
        %vm477 = vmor %vm475, %vm476
        %v478 = vsel %vm477, %v470, %v474
        %v479 = vand.u32 2147483647, %v438
        %vm480 = vcmp.eq.f32.partialorder %v479, 8.507059e+37
        %v481 = vand.u32 %v438, 2147483648
        %v482 = vor.u32 1.1754944e-38, %v481
        %v483 = vsel %vm480, %v482, %v478
        %v484 = vmul.f32 1.0, %v483
        %v485 = vrcp.pop %v439
        %v486 = vmul.f32 %v439, %v485
        %v487 = vsub.f32 1.0, %v486
        %v488 = vmul.f32 %v485, %v487
        %v489 = vadd.f32 %v485, %v488
        %vm490 = vweird.f32 %v439
        %vm491 = vweird.f32 %v485
        %vm492 = vmor %vm490, %vm491
        %v493 = vsel %vm492, %v485, %v489
        %v494 = vand.u32 2147483647, %v439
        %vm495 = vcmp.eq.f32.partialorder %v494, 8.507059e+37
        %v496 = vand.u32 %v439, 2147483648
        %v497 = vor.u32 1.1754944e-38, %v496
        %v498 = vsel %vm495, %v497, %v493
        %v499 = vmul.f32 1.0, %v498
        %v500 = vmul.f32 %v363, %v363
        %v501 = vmul.f32 %v364, %v364
        %v502 = vmul.f32 %v365, %v365
        %v503 = vmul.f32 %v366, %v366
        %v504 = vsel %vm375, %v500, 0.0
        %505 = vadd.xlane.f32.xlu0 %v504
        %v506 = vpop.xlane.xlu0 %505
        %v507 = vsel %vm375, %v501, 0.0
        %508 = vadd.xlane.f32.xlu0 %v507
        %v509 = vpop.xlane.xlu0 %508
        %v510 = vsel %vm375, %v502, 0.0
        %511 = vadd.xlane.f32.xlu0 %v510
        %v512 = vpop.xlane.xlu0 %511
        %v513 = vsel %vm375, %v503, 0.0
        %514 = vadd.xlane.f32.xlu0 %v513
        %v515 = vpop.xlane.xlu0 %514
        %v516 = vrsqrt.pop %v506
        %v517 = vmul.f32 %v516, %v506
        %v518 = vmul.f32 %v517, %v516
        %v519 = vmul.f32 0.5, %v518
        %v520 = vsub.f32 1.5, %v519
        %v521 = vmul.f32 %v516, %v520
        %v522 = vmul.f32 %v506, %v521
        %vm523 = vcmp.eq.f32.partialorder %v506, inf
        %v524 = vsel %vm523, %v506, %v522
        %vm525 = vcmp.eq.f32.partialorder %v506, 0.0
        %v526 = vand.u32 %v506, 2147483648
        %v527 = vsel %vm525, %v526, %v524
        %v528 = vrsqrt.pop %v509
        %v529 = vmul.f32 %v528, %v509
        %v530 = vmul.f32 %v529, %v528
        %v531 = vmul.f32 0.5, %v530
        %v532 = vsub.f32 1.5, %v531
        %v533 = vmul.f32 %v528, %v532
        %v534 = vmul.f32 %v509, %v533
        %vm535 = vcmp.eq.f32.partialorder %v509, inf
        %v536 = vsel %vm535, %v509, %v534
        %vm537 = vcmp.eq.f32.partialorder %v509, 0.0
        %v538 = vand.u32 %v509, 2147483648
        %v539 = vsel %vm537, %v538, %v536
        %v540 = vrsqrt.pop %v512
        %v541 = vmul.f32 %v540, %v512
        %v542 = vmul.f32 %v541, %v540
        %v543 = vmul.f32 0.5, %v542
        %v544 = vsub.f32 1.5, %v543
        %v545 = vmul.f32 %v540, %v544
        %v546 = vmul.f32 %v512, %v545
        %vm547 = vcmp.eq.f32.partialorder %v512, inf
        %v548 = vsel %vm547, %v512, %v546
        %vm549 = vcmp.eq.f32.partialorder %v512, 0.0
        %v550 = vand.u32 %v512, 2147483648
        %v551 = vsel %vm549, %v550, %v548
        %v552 = vrsqrt.pop %v515
        %v553 = vmul.f32 %v552, %v515
        %v554 = vmul.f32 %v553, %v552
        %v555 = vmul.f32 0.5, %v554
        %v556 = vsub.f32 1.5, %v555
        %v557 = vmul.f32 %v552, %v556
        %v558 = vmul.f32 %v515, %v557
        %vm559 = vcmp.eq.f32.partialorder %v515, inf
        %v560 = vsel %vm559, %v515, %v558
        %vm561 = vcmp.eq.f32.partialorder %v515, 0.0
        %v562 = vand.u32 %v515, 2147483648
        %v563 = vsel %vm561, %v562, %v560
        %v564 = vmax.f32 %v527, 1e-12
        %v565 = vmax.f32 %v539, 1e-12
        %v566 = vmax.f32 %v551, 1e-12
        %v567 = vmax.f32 %v563, 1e-12
        %v568 = vrcp.pop %v564
        %v569 = vmul.f32 %v564, %v568
        %v570 = vsub.f32 1.0, %v569
        %v571 = vmul.f32 %v568, %v570
        %v572 = vadd.f32 %v568, %v571
        %vm573 = vweird.f32 %v564
        %vm574 = vweird.f32 %v568
        %vm575 = vmor %vm573, %vm574
        %v576 = vsel %vm575, %v568, %v572
        %v577 = vand.u32 2147483647, %v564
        %vm578 = vcmp.eq.f32.partialorder %v577, 8.507059e+37
        %v579 = vand.u32 %v564, 2147483648
        %v580 = vor.u32 1.1754944e-38, %v579
        %v581 = vsel %vm578, %v580, %v576
        %v582 = vmul.f32 1.0, %v581
        %v583 = vrcp.pop %v565
        %v584 = vmul.f32 %v565, %v583
        %v585 = vsub.f32 1.0, %v584
        %v586 = vmul.f32 %v583, %v585
        %v587 = vadd.f32 %v583, %v586
        %vm588 = vweird.f32 %v565
        %vm589 = vweird.f32 %v583
        %vm590 = vmor %vm588, %vm589
        %v591 = vsel %vm590, %v583, %v587
        %v592 = vand.u32 2147483647, %v565
        %vm593 = vcmp.eq.f32.partialorder %v592, 8.507059e+37
        %v594 = vand.u32 %v565, 2147483648
        %v595 = vor.u32 1.1754944e-38, %v594
        %v596 = vsel %vm593, %v595, %v591
        %v597 = vmul.f32 1.0, %v596
        %v598 = vrcp.pop %v566
        %v599 = vmul.f32 %v566, %v598
        %v600 = vsub.f32 1.0, %v599
        %v601 = vmul.f32 %v598, %v600
        %v602 = vadd.f32 %v598, %v601
        %vm603 = vweird.f32 %v566
        %vm604 = vweird.f32 %v598
        %vm605 = vmor %vm603, %vm604
        %v606 = vsel %vm605, %v598, %v602
        %v607 = vand.u32 2147483647, %v566
        %vm608 = vcmp.eq.f32.partialorder %v607, 8.507059e+37
        %v609 = vand.u32 %v566, 2147483648
        %v610 = vor.u32 1.1754944e-38, %v609
        %v611 = vsel %vm608, %v610, %v606
        %v612 = vmul.f32 1.0, %v611
        %v613 = vrcp.pop %v567
        %v614 = vmul.f32 %v567, %v613
        %v615 = vsub.f32 1.0, %v614
        %v616 = vmul.f32 %v613, %v615
        %v617 = vadd.f32 %v613, %v616
        %vm618 = vweird.f32 %v567
        %vm619 = vweird.f32 %v613
        %vm620 = vmor %vm618, %vm619
        %v621 = vsel %vm620, %v613, %v617
        %v622 = vand.u32 2147483647, %v567
        %vm623 = vcmp.eq.f32.partialorder %v622, 8.507059e+37
        %v624 = vand.u32 %v567, 2147483648
        %v625 = vor.u32 1.1754944e-38, %v624
        %v626 = vsel %vm623, %v625, %v621
        %v627 = vmul.f32 1.0, %v626
        %v628 = vmul.f32 %v359, %v454
        %v629 = vmul.f32 %v360, %v469
        %v630 = vmul.f32 %v361, %v484
        %v631 = vmul.f32 %v362, %v499
        %v632 = vmul.f32 %v363, %v582
        %v633 = vmul.f32 %v364, %v597
        %v634 = vmul.f32 %v365, %v612
        %v635 = vmul.f32 %v366, %v627
        %s636 = smul.u32 32, 1
        %s637 = sshll.u32 %s636, 4
        %638 = dma.done [#allocation3], %s637
        %s639 = sshll.u32 %s636, 4
        %640 = dma.done %s307, %s639
        %s641 = sshll.u32 %s636, 4
        %642 = dma.done %s326, %s641
        %s643 = sshll.u32 %s636, 4
        %644 = dma.done %s345, %s643
        %v645 = vld [vmem:[#allocation2] sm:$0xff]
        %v646 = vld [vmem:[#allocation2 + $0x8] sm:$0xff]
        %v647 = vld [vmem:[#allocation2 + $0x10] sm:$0xff]
        %v648 = vld [vmem:[#allocation2 + $0x18] sm:$0xff]
        %v649 = vld [vmem:[#allocation2 + $0x20] sm:$0xff]
        %v650 = vld [vmem:[#allocation2 + $0x28] sm:$0xff]
        %v651 = vld [vmem:[#allocation2 + $0x30] sm:$0xff]
        %v652 = vld [vmem:[#allocation2 + $0x38] sm:$0xff]
        %v653 = vld [vmem:[#allocation2 + $0x40] sm:$0xff]
        %v654 = vld [vmem:[#allocation2 + $0x48] sm:$0xff]
        %v655 = vld [vmem:[#allocation2 + $0x50] sm:$0xff]
        %v656 = vld [vmem:[#allocation2 + $0x58] sm:$0xff]
        %v657 = vld [vmem:[#allocation2 + $0x60] sm:$0xff]
        %v658 = vld [vmem:[#allocation2 + $0x68] sm:$0xff]
        %v659 = vld [vmem:[#allocation2 + $0x70] sm:$0xff]
        %v660 = vld [vmem:[#allocation2 + $0x78] sm:$0xff]
        %v661 = vmul.f32 %v645, %v645
        %v662 = vmul.f32 %v646, %v646
        %v663 = vmul.f32 %v647, %v647
        %v664 = vmul.f32 %v648, %v648
        %v665 = vmul.f32 %v649, %v649
        %v666 = vmul.f32 %v650, %v650
        %v667 = vmul.f32 %v651, %v651
        %v668 = vmul.f32 %v652, %v652
        %v669 = vmul.f32 %v653, %v653
        %v670 = vmul.f32 %v654, %v654
        %v671 = vmul.f32 %v655, %v655
        %v672 = vmul.f32 %v656, %v656
        %v673 = vmul.f32 %v657, %v657
        %v674 = vmul.f32 %v658, %v658
        %v675 = vmul.f32 %v659, %v659
        %v676 = vmul.f32 %v660, %v660
        %v677 = vsel %vm375, %v661, 0.0
        %678 = vadd.xlane.f32.xlu0 %v677
        %v679 = vpop.xlane.xlu0 %678
        %v680 = vsel %vm375, %v662, 0.0
        %681 = vadd.xlane.f32.xlu0 %v680
        %v682 = vpop.xlane.xlu0 %681
        %v683 = vsel %vm375, %v663, 0.0
        %684 = vadd.xlane.f32.xlu0 %v683
        %v685 = vpop.xlane.xlu0 %684
        %v686 = vsel %vm375, %v664, 0.0
        %687 = vadd.xlane.f32.xlu0 %v686
        %v688 = vpop.xlane.xlu0 %687
        %v689 = vsel %vm375, %v665, 0.0
        %690 = vadd.xlane.f32.xlu0 %v689
        %v691 = vpop.xlane.xlu0 %690
        %v692 = vsel %vm375, %v666, 0.0
        %693 = vadd.xlane.f32.xlu0 %v692
        %v694 = vpop.xlane.xlu0 %693
        %v695 = vsel %vm375, %v667, 0.0
        %696 = vadd.xlane.f32.xlu0 %v695
        %v697 = vpop.xlane.xlu0 %696
        %v698 = vsel %vm375, %v668, 0.0
        %699 = vadd.xlane.f32.xlu0 %v698
        %v700 = vpop.xlane.xlu0 %699
        %v701 = vsel %vm375, %v669, 0.0
        %702 = vadd.xlane.f32.xlu0 %v701
        %v703 = vpop.xlane.xlu0 %702
        %v704 = vsel %vm375, %v670, 0.0
        %705 = vadd.xlane.f32.xlu0 %v704
        %v706 = vpop.xlane.xlu0 %705
        %v707 = vsel %vm375, %v671, 0.0
        %708 = vadd.xlane.f32.xlu0 %v707
        %v709 = vpop.xlane.xlu0 %708
        %v710 = vsel %vm375, %v672, 0.0
        %711 = vadd.xlane.f32.xlu0 %v710
        %v712 = vpop.xlane.xlu0 %711
        %v713 = vsel %vm375, %v673, 0.0
        %714 = vadd.xlane.f32.xlu0 %v713
        %v715 = vpop.xlane.xlu0 %714
        %v716 = vsel %vm375, %v674, 0.0
        %717 = vadd.xlane.f32.xlu0 %v716
        %v718 = vpop.xlane.xlu0 %717
        %v719 = vsel %vm375, %v675, 0.0
        %720 = vadd.xlane.f32.xlu0 %v719
        %v721 = vpop.xlane.xlu0 %720
        %v722 = vsel %vm375, %v676, 0.0
        %723 = vadd.xlane.f32.xlu0 %v722
        %v724 = vpop.xlane.xlu0 %723
        %v741 = vlaneseq
        %v742 = vand.u32 %v741, 127
        %v743 = vperm.slane %v679, %v742
        %v744 = vadd.s32 %v742, 4294967288
        %v745 = vperm.slane %v682, %v744
        %vm746 = vcmask 130112
        %v747 = vsel %vm746, %v745, %v743
        %v748 = vadd.s32 %v742, 4294967280
        %v749 = vperm.slane %v685, %v748
        %vm750 = vcmask 195712
        %v751 = vsel %vm750, %v749, %v747
        %v752 = vadd.s32 %v742, 4294967272
        %v753 = vperm.slane %v688, %v752
        %vm754 = vcmask 261312
        %v755 = vsel %vm754, %v753, %v751
        %v756 = vperm.slane %v691, %v742
        %v757 = vperm.slane %v694, %v744
        %v758 = vsel %vm746, %v757, %v756
        %v759 = vperm.slane %v697, %v748
        %v760 = vsel %vm750, %v759, %v758
        %v761 = vperm.slane %v700, %v752
        %v762 = vsel %vm754, %v761, %v760
        %v763 = vperm.slane %v703, %v742
        %v764 = vperm.slane %v706, %v744
        %v765 = vsel %vm746, %v764, %v763
        %v766 = vperm.slane %v709, %v748
        %v767 = vsel %vm750, %v766, %v765
        %v768 = vperm.slane %v712, %v752
        %v769 = vsel %vm754, %v768, %v767
        %v770 = vperm.slane %v715, %v742
        %v771 = vperm.slane %v718, %v744
        %v772 = vsel %vm746, %v771, %v770
        %v773 = vperm.slane %v721, %v748
        %v774 = vsel %vm750, %v773, %v772
        %v775 = vperm.slane %v724, %v752
        %v776 = vsel %vm754, %v775, %v774
        %vm777 = vcmask 1041409
        %v778 = vsel %vm777, %v762, %v755
        %vm779 = vcmask 1042434
        %v780 = vsel %vm779, %v769, %v778
        %vm781 = vcmask 1043459
        %v782 = vsel %vm781, %v776, %v780
        %vm784 = vcmask 257024
        %v785 = vsel %vm784, %v782, 0.0
        %786 = vadd.xlane.f32.xlu0 %v785
        %v787 = vpop.xlane.xlu0 %786
        %v788 = vrsqrt.pop %v787
        %v789 = vmul.f32 %v788, %v787
        %v790 = vmul.f32 %v789, %v788
        %v791 = vmul.f32 0.5, %v790
        %v792 = vsub.f32 1.5, %v791
        %v793 = vmul.f32 %v788, %v792
        %v794 = vmul.f32 %v787, %v793
        %vm795 = vcmp.eq.f32.partialorder %v787, inf
        %v796 = vsel %vm795, %v787, %v794
        %vm797 = vcmp.eq.f32.partialorder %v787, 0.0
        %v798 = vand.u32 %v787, 2147483648
        %v799 = vsel %vm797, %v798, %v796
        %v800 = vmax.f32 %v799, 1e-12
        %v801 = vrcp.pop %v800
        %v802 = vmul.f32 %v800, %v801
        %v803 = vsub.f32 1.0, %v802
        %v804 = vmul.f32 %v801, %v803
        %v805 = vadd.f32 %v801, %v804
        %vm806 = vweird.f32 %v800
        %vm807 = vweird.f32 %v801
        %vm808 = vmor %vm806, %vm807
        %v809 = vsel %vm808, %v801, %v805
        %v810 = vand.u32 2147483647, %v800
        %vm811 = vcmp.eq.f32.partialorder %v810, 8.507059e+37
        %v812 = vand.u32 %v800, 2147483648
        %v813 = vor.u32 1.1754944e-38, %v812
        %v814 = vsel %vm811, %v813, %v809
        %v815 = vmul.f32 1.0, %v814
        %v817 = vsel %vm375, %v628, 0
        %819 = vmatpush.msra.mxu0 0.0
        %820 = vmatpush.msra.mxu0 0.0
        %821 = vmatpush.msra.mxu0 0.0
        %822 = vmatpush.msra.mxu0 0.0
        %823 = vmatpush.msra.mxu0 0.0
        %824 = vmatpush.msra.mxu0 0.0
        %825 = vmatpush.msra.mxu0 0.0
        %826 = vmatpush.msra.mxu0 0.0
        %827 = vmatpush.msra.mxu0 0.0
        %828 = vmatpush.msra.mxu0 0.0
        %829 = vmatpush.msra.mxu0 0.0
        %830 = vmatpush.msra.mxu0 0.0
        %831 = vmatpush.msra.mxu0 %v648
        %832 = vmatpush.msra.mxu0 %v647
        %833 = vmatpush.msra.mxu0 %v646
        %834 = vmatpush.msra.mxu0 %v645
        %835 = vmatmul.f32.gmra.mxu0 %v817
        %v836 = vpop.f32.mrf.mxu0
        %v837 = vadd.f32 0.0, %v836
        %838 = vdwg.mxu0
        %v840 = vsel %vm375, %v629, 0
        %842 = vmatpush.msra.mxu0 0.0
        %843 = vmatpush.msra.mxu0 0.0
        %844 = vmatpush.msra.mxu0 0.0
        %845 = vmatpush.msra.mxu0 0.0
        %846 = vmatpush.msra.mxu0 0.0
        %847 = vmatpush.msra.mxu0 0.0
        %848 = vmatpush.msra.mxu0 0.0
        %849 = vmatpush.msra.mxu0 0.0
        %850 = vmatpush.msra.mxu0 0.0
        %851 = vmatpush.msra.mxu0 0.0
        %852 = vmatpush.msra.mxu0 0.0
        %853 = vmatpush.msra.mxu0 0.0
        %854 = vmatpush.msra.mxu0 %v652
        %855 = vmatpush.msra.mxu0 %v651
        %856 = vmatpush.msra.mxu0 %v650
        %857 = vmatpush.msra.mxu0 %v649
        %858 = vmatmul.f32.gmra.mxu0 %v840
        %v859 = vpop.f32.mrf.mxu0
        %v860 = vadd.f32 0.0, %v859
        %861 = vdwg.mxu0
        %v863 = vsel %vm375, %v630, 0
        %865 = vmatpush.msra.mxu0 0.0
        %866 = vmatpush.msra.mxu0 0.0
        %867 = vmatpush.msra.mxu0 0.0
        %868 = vmatpush.msra.mxu0 0.0
        %869 = vmatpush.msra.mxu0 0.0
        %870 = vmatpush.msra.mxu0 0.0
        %871 = vmatpush.msra.mxu0 0.0
        %872 = vmatpush.msra.mxu0 0.0
        %873 = vmatpush.msra.mxu0 0.0
        %874 = vmatpush.msra.mxu0 0.0
        %875 = vmatpush.msra.mxu0 0.0
        %876 = vmatpush.msra.mxu0 0.0
        %877 = vmatpush.msra.mxu0 %v656
        %878 = vmatpush.msra.mxu0 %v655
        %879 = vmatpush.msra.mxu0 %v654
        %880 = vmatpush.msra.mxu0 %v653
        %881 = vmatmul.f32.gmra.mxu0 %v863
        %v882 = vpop.f32.mrf.mxu0
        %v883 = vadd.f32 0.0, %v882
        %884 = vdwg.mxu0
        %v886 = vsel %vm375, %v631, 0
        %888 = vmatpush.msra.mxu0 0.0
        %889 = vmatpush.msra.mxu0 0.0
        %890 = vmatpush.msra.mxu0 0.0
        %891 = vmatpush.msra.mxu0 0.0
        %892 = vmatpush.msra.mxu0 0.0
        %893 = vmatpush.msra.mxu0 0.0
        %894 = vmatpush.msra.mxu0 0.0
        %895 = vmatpush.msra.mxu0 0.0
        %896 = vmatpush.msra.mxu0 0.0
        %897 = vmatpush.msra.mxu0 0.0
        %898 = vmatpush.msra.mxu0 0.0
        %899 = vmatpush.msra.mxu0 0.0
        %900 = vmatpush.msra.mxu0 %v660
        %901 = vmatpush.msra.mxu0 %v659
        %902 = vmatpush.msra.mxu0 %v658
        %903 = vmatpush.msra.mxu0 %v657
        %904 = vmatmul.f32.gmra.mxu0 %v886
        %v905 = vpop.f32.mrf.mxu0
        %v906 = vadd.f32 0.0, %v905
        %907 = vdwg.mxu0
        %v909 = vsel %vm375, %v837, 0
        %v912 = vsel %vm375, %v632, 0
        %914 = vmatpush.xpose.msra.mxu0 0.0
        %915 = vmatpush.xpose.msra.mxu0 0.0
        %916 = vmatpush.xpose.msra.mxu0 0.0
        %917 = vmatpush.xpose.msra.mxu0 0.0
        %918 = vmatpush.xpose.msra.mxu0 0.0
        %919 = vmatpush.xpose.msra.mxu0 0.0
        %920 = vmatpush.xpose.msra.mxu0 0.0
        %921 = vmatpush.xpose.msra.mxu0 0.0
        %922 = vmatpush.xpose.msra.mxu0 0.0
        %923 = vmatpush.xpose.msra.mxu0 0.0
        %924 = vmatpush.xpose.msra.mxu0 0.0
        %925 = vmatpush.xpose.msra.mxu0 0.0
        %926 = vmatpush.xpose.msra.mxu0 0.0
        %927 = vmatpush.xpose.msra.mxu0 0.0
        %928 = vmatpush.xpose.msra.mxu0 0.0
        %929 = vmatpush.xpose.msra.mxu0 %v912
        %930 = vmatmul.f32.gmra.mxu0 %v909
        %v931 = vpop.f32.mrf.mxu0
        %v932 = vadd.f32 0.0, %v931
        %933 = vdwg.mxu0
        %v935 = vsel %vm375, %v860, 0
        %v938 = vsel %vm375, %v633, 0
        %940 = vmatpush.xpose.msra.mxu0 0.0
        %941 = vmatpush.xpose.msra.mxu0 0.0
        %942 = vmatpush.xpose.msra.mxu0 0.0
        %943 = vmatpush.xpose.msra.mxu0 0.0
        %944 = vmatpush.xpose.msra.mxu0 0.0
        %945 = vmatpush.xpose.msra.mxu0 0.0
        %946 = vmatpush.xpose.msra.mxu0 0.0
        %947 = vmatpush.xpose.msra.mxu0 0.0
        %948 = vmatpush.xpose.msra.mxu0 0.0
        %949 = vmatpush.xpose.msra.mxu0 0.0
        %950 = vmatpush.xpose.msra.mxu0 0.0
        %951 = vmatpush.xpose.msra.mxu0 0.0
        %952 = vmatpush.xpose.msra.mxu0 0.0
        %953 = vmatpush.xpose.msra.mxu0 0.0
        %954 = vmatpush.xpose.msra.mxu0 0.0
        %955 = vmatpush.xpose.msra.mxu0 %v938
        %956 = vmatmul.f32.gmra.mxu0 %v935
        %v957 = vpop.f32.mrf.mxu0
        %v958 = vadd.f32 0.0, %v957
        %959 = vdwg.mxu0
        %v961 = vsel %vm375, %v883, 0
        %v964 = vsel %vm375, %v634, 0
        %966 = vmatpush.xpose.msra.mxu0 0.0
        %967 = vmatpush.xpose.msra.mxu0 0.0
        %968 = vmatpush.xpose.msra.mxu0 0.0
        %969 = vmatpush.xpose.msra.mxu0 0.0
        %970 = vmatpush.xpose.msra.mxu0 0.0
        %971 = vmatpush.xpose.msra.mxu0 0.0
        %972 = vmatpush.xpose.msra.mxu0 0.0
        %973 = vmatpush.xpose.msra.mxu0 0.0
        %974 = vmatpush.xpose.msra.mxu0 0.0
        %975 = vmatpush.xpose.msra.mxu0 0.0
        %976 = vmatpush.xpose.msra.mxu0 0.0
        %977 = vmatpush.xpose.msra.mxu0 0.0
        %978 = vmatpush.xpose.msra.mxu0 0.0
        %979 = vmatpush.xpose.msra.mxu0 0.0
        %980 = vmatpush.xpose.msra.mxu0 0.0
        %981 = vmatpush.xpose.msra.mxu0 %v964
        %982 = vmatmul.f32.gmra.mxu0 %v961
        %v983 = vpop.f32.mrf.mxu0
        %v984 = vadd.f32 0.0, %v983
        %985 = vdwg.mxu0
        %v987 = vsel %vm375, %v906, 0
        %v990 = vsel %vm375, %v635, 0
        %992 = vmatpush.xpose.msra.mxu0 0.0
        %993 = vmatpush.xpose.msra.mxu0 0.0
        %994 = vmatpush.xpose.msra.mxu0 0.0
        %995 = vmatpush.xpose.msra.mxu0 0.0
        %996 = vmatpush.xpose.msra.mxu0 0.0
        %997 = vmatpush.xpose.msra.mxu0 0.0
        %998 = vmatpush.xpose.msra.mxu0 0.0
        %999 = vmatpush.xpose.msra.mxu0 0.0
        %1000 = vmatpush.xpose.msra.mxu0 0.0
        %1001 = vmatpush.xpose.msra.mxu0 0.0
        %1002 = vmatpush.xpose.msra.mxu0 0.0
        %1003 = vmatpush.xpose.msra.mxu0 0.0
        %1004 = vmatpush.xpose.msra.mxu0 0.0
        %1005 = vmatpush.xpose.msra.mxu0 0.0
        %1006 = vmatpush.xpose.msra.mxu0 0.0
        %1007 = vmatpush.xpose.msra.mxu0 %v990
        %1008 = vmatmul.f32.gmra.mxu0 %v987
        %v1009 = vpop.f32.mrf.mxu0
        %v1010 = vadd.f32 0.0, %v1009
        %1011 = vdwg.mxu0
        %v1012 = vmul.f32 %v367, %v932
        %v1013 = vmul.f32 %v368, %v958
        %v1014 = vmul.f32 %v369, %v984
        %v1015 = vmul.f32 %v370, %v1010
        %vm1016 = vcmask 64512
        %v1017 = vsel %vm1016, %v1012, 0.0
        %1018 = vadd.xlane.f32.xlu0 %v1017
        %v1019 = vpop.xlane.xlu0 %1018
        %v1020 = vsel %vm1016, %v1013, 0.0
        %1021 = vadd.xlane.f32.xlu0 %v1020
        %v1022 = vpop.xlane.xlu0 %1021
        %v1023 = vsel %vm1016, %v1014, 0.0
        %1024 = vadd.xlane.f32.xlu0 %v1023
        %v1025 = vpop.xlane.xlu0 %1024
        %v1026 = vsel %vm1016, %v1015, 0.0
        %1027 = vadd.xlane.f32.xlu0 %v1026
        %v1028 = vpop.xlane.xlu0 %1027
        %v1033 = vperm.slane %v1019, %v742
        %v1034 = vperm.slane %v1022, %v742
        %v1035 = vperm.slane %v1025, %v742
        %v1036 = vperm.slane %v1028, %v742
        %v1037 = vsel %vm777, %v1034, %v1033
        %v1038 = vsel %vm779, %v1035, %v1037
        %v1039 = vsel %vm781, %v1036, %v1038
        %vm1041 = vcmask 60416
        %v1042 = vsel %vm1041, %v1039, 0.0
        %1043 = vadd.xlane.f32.xlu0 %v1042
        %v1044 = vpop.xlane.xlu0 %1043
        %v1045 = vmul.f32 %v1044, %v815
        %vm1046 = vcmask 3072
        %1047 = vst.msk [vmem:[%s284] sm:$0xf] %vm1046, %v1045
        %p1048 = scmp.lt.s32.totalorder %s30, 1
        %s1049 = scalar_select %p1048, %s30, 1
        %s1050 = smul.addr %s1049, 4
        %s1051 = scalar_lea.vmem %s5, %s1050
        // Predicated region
        $region61: #{tpu_custom_call.1} parent=31 // pred_check
          %p1052 = pneg %p126
        $region62: #{tpu_custom_call.1} parent=31 // pred_check_branch
          %1054 = sbr.rel (%p1052) target = $region64
        $region63: #{tpu_custom_call.1} parent=31 // pred_region
          _
        $region64: #{tpu_custom_call.1} parent=31 // pred_fallthru
          _
      $region32: #{tpu_custom_call.1} parent=5 // pred_fallthru
        _
      %p1055 = scmp.le.s32.totalorder 2, %s25
      // Predicated region
      $region65: #{tpu_custom_call.1} parent=5 // pred_check
        %p1056 = pneg %p1055
      $region66: #{tpu_custom_call.1} parent=5 // pred_check_branch
        %1058 = sbr.rel (%p1056) target = $region68
      $region67: #{tpu_custom_call.1} parent=5 // pred_region
        %s1059 = ssub.s32 %s25, 2
        // Predicated region
        $region69: #{tpu_custom_call.1} parent=67 // pred_check
          %p1060 = pneg %p132
        $region70: #{tpu_custom_call.1} parent=67 // pred_check_branch
          %1062 = sbr.rel (%p1060) target = $region72
        $region71: #{tpu_custom_call.1} parent=67 // pred_region
          %p1063 = scmp.lt.s32.totalorder %s31, 1
          %s1064 = scalar_select %p1063, %s31, 1
          %s1065 = smul.addr %s1064, 4
          %s1066 = scalar_lea.vmem %s5, %s1065
        $region72: #{tpu_custom_call.1} parent=67 // pred_fallthru
          _
      $region68: #{tpu_custom_call.1} parent=5 // pred_fallthru
        _
    $region6: #{tpu_custom_call.1} parent=1 // loop_footer
      %s29 = sadd.s32 1, %s25
    $region7: #{tpu_custom_call.1} parent=1 // loop_footer_branch
      %24 = sbr.rel target = $region3
    $region8: #{tpu_custom_call.1} parent=1 // loop_exit
      _
    %1067 = vsyncpa [#allocation7], 1
    %s1068 = scalar_lea.sflag [#allocation7], 1
    %1069 = vsyncpa %s1068, 1
    %1070 = vsyncpa [#allocation9], 1
    %s1071 = scalar_lea.sflag [#allocation9], 1
    %1072 = vsyncpa %s1071, 1
  %1073 = vsyncmov [#allocation3]
  %s1074 = vpop.sfrf %1073
  %p1075 = scmp.eq.s32.totalorder %s1074, 0
  %p1076 = pneg %p1075
  %1078 = shalt.err (%p1076)
  %s1079 = scalar_lea.sflag [#allocation3], 1
  %1080 = vsyncmov %s1079
  %s1081 = vpop.sfrf %1080
  %p1082 = scmp.eq.s32.totalorder %s1081, 0
  %p1083 = pneg %p1082
  %1085 = shalt.err (%p1083)
  %s1086 = scalar_lea.sflag [#allocation3], 2
  %1087 = vsyncmov %s1086
  %s1088 = vpop.sfrf %1087
  %p1089 = scmp.eq.s32.totalorder %s1088, 0
  %p1090 = pneg %p1089
  %1092 = shalt.err (%p1090)
  %s1093 = scalar_lea.sflag [#allocation3], 3
  %1094 = vsyncmov %s1093
  %s1095 = vpop.sfrf %1094
  %p1096 = scmp.eq.s32.totalorder %s1095, 0
  %p1097 = pneg %p1096
  %1099 = shalt.err (%p1097)

</llo_original>
